<compile_context>
chip_gen: v6e
topology: v6e:2x2x1
jax: 0.10.0
libtpu: 0.0.40
codegen_flags: <defaults>
</compile_context>

<pallas_src>
import functools
import math

import jax
import jax.numpy as jnp
from jax.experimental import pallas as pl
from jax.experimental.pallas import tpu as pltpu


def _round_up(x, m):
    return ((x + m - 1) // m) * m


def _memory_unit_kernel(x_ref, wt_ref, w_ref, out_ref, att_ref, *, shrink_thres):
    x = x_ref[...]            # (tile, F)  native dtype
    wt = wt_ref[...]          # (F, M)     pre-transposed weight (grid-invariant)

    # att_weight = F.linear(input, weight) = x @ w.T = x @ wt   (MXU, f32 acc)
    att = jnp.dot(x, wt, preferred_element_type=jnp.float32)    # (tile, M) f32

    # softmax over the memory dimension (dim=1); exact per-row reciprocal.
    att = att - jnp.max(att, axis=1, keepdims=True)
    att = jnp.exp(att)
    att = att / jnp.sum(att, axis=1, keepdims=True)

    if shrink_thres > 0:
        # hard_shrink_relu(att, lambd) == where(att > lambd, att, 0) up to the
        # 1e-12 eps smoothing exactly at the threshold.
        att = jnp.where(att > jnp.float32(shrink_thres), att, jnp.float32(0.0))
        # F.normalize(att, p=1, dim=1); att >= 0 here so the abs is skipped.
        l1 = jnp.maximum(jnp.sum(att, axis=1, keepdims=True), jnp.float32(1e-12))
        att = att / l1

    # output = F.linear(att, weight.T) = att @ w   (MXU, f32 acc)
    w = w_ref[...]            # (M, F)
    out = jnp.dot(att.astype(w.dtype), w, preferred_element_type=jnp.float32)

    out_ref[...] = out.astype(out_ref.dtype)
    att_ref[...] = att.astype(att_ref.dtype)


def memory_unit_forward(x, weight, shrink_thres=0.0025, tile_t=512):
    """x: (T, fea_dim), weight: (mem_dim, fea_dim) -> dict(output, att)."""
    T, fea_dim = x.shape
    mem_dim, fea_dim_w = weight.shape
    assert fea_dim == fea_dim_w

    # Pre-transposed copy so both matmuls are plain NN dots in-kernel.
    w_t = weight.T            # (F, M), one small XLA pass over the weight only

    # Row tile rounded to the dtype's sublane multiple.  No HBM padding of T:
    # the partial last block is read-padded / write-clipped by Pallas, which is
    # exact here because all ops are row-independent.
    sub = 16 if jnp.dtype(x.dtype).itemsize == 2 else 8
    tile = max(sub, min(_round_up(tile_t, sub), _round_up(T, sub)))
    # Keep at least 2 grid steps so "parallel" can shard across v7x's 2 TCs.
    if pl.cdiv(T, tile) < 2 and T > sub:
        tile = max(sub, _round_up(pl.cdiv(T, 2), sub))
    grid = (pl.cdiv(T, tile),)

    # VMEM request derived from the real footprint (double-buffered x/out/att
    # tiles + both resident weight copies + f32 intermediates), capped at 32 MiB.
    itemsize = jnp.dtype(x.dtype).itemsize
    buf_bytes = 2 * tile * (2 * fea_dim + mem_dim) * itemsize     # x / out / att tiles
    buf_bytes += 2 * 2 * mem_dim * fea_dim * itemsize             # w and w.T
    buf_bytes += 2 * tile * (mem_dim + fea_dim) * 4               # f32 intermediates
    vmem_bytes = min(32 * 1024 * 1024, max(16 * 1024 * 1024, 2 * buf_bytes))

    kernel = functools.partial(_memory_unit_kernel, shrink_thres=shrink_thres)

    out, att = pl.pallas_call(
        kernel,
        out_shape=(
            jax.ShapeDtypeStruct((T, fea_dim), x.dtype),
            jax.ShapeDtypeStruct((T, mem_dim), x.dtype),
        ),
        grid_spec=pl.GridSpec(
            grid=grid,
            in_specs=[
                # streaming input, tiled over T (full fea_dim as last block dim)
                pl.BlockSpec((tile, fea_dim), lambda i: (i, 0)),
                # grid-invariant weight copies (constant index_map -> VMEM-resident)
                pl.BlockSpec((fea_dim, mem_dim), lambda i: (0, 0)),
                pl.BlockSpec((mem_dim, fea_dim), lambda i: (0, 0)),
            ],
            out_specs=[
                pl.BlockSpec((tile, fea_dim), lambda i: (i, 0)),
                pl.BlockSpec((tile, mem_dim), lambda i: (i, 0)),
            ],
        ),
        compiler_params=pltpu.CompilerParams(
            dimension_semantics=("parallel",),
            vmem_limit_bytes=vmem_bytes,
        ),
    )(x, w_t, weight)

    return {"output": out, "att": att}


def reference_forward(x, weight, shrink_thres=0.0025):
    att = x @ weight.T
    att = jax.nn.softmax(att, axis=1)
    if shrink_thres > 0:
        shifted = att - shrink_thres
        att = jnp.maximum(shifted, 0.0) * att / (jnp.abs(shifted) + 1e-12)
        att = att / jnp.maximum(jnp.sum(jnp.abs(att), axis=1, keepdims=True),
                                1e-12)
    out = att @ weight
    return {"output": out, "att": att}


if __name__ == "__main__":
    # ASTNet-style sizes (small): feature map (N, C, H, W) with C = fea_dim,
    # flattened to (N*H*W, C) tokens before the memory unit.
    N, C, H, W = 2, 32, 16, 16
    mem_dim, fea_dim = 128, C
    shrink_thres = 0.0025

    key = jax.random.PRNGKey(0)
    kx, kw = jax.random.split(key)

    # deterministic init matching reset_parameters: uniform(-stdv, stdv)
    stdv = 1.0 / math.sqrt(fea_dim)
    weight = jax.random.uniform(kw, (mem_dim, fea_dim), jnp.float32,
                                minval=-stdv, maxval=stdv)

    fmap = jax.random.normal(kx, (N, C, H, W), jnp.float32)
    x = jnp.transpose(fmap, (0, 2, 3, 1)).reshape(N * H * W, fea_dim)

    result = memory_unit_forward(x, weight, shrink_thres=shrink_thres)
    jax.block_until_ready(result)

    ref = reference_forward(x, weight, shrink_thres=shrink_thres)
    # tightened vs previous version (exact per-row reciprocals in-kernel)
    assert jnp.allclose(result["output"], ref["output"], atol=1e-3, rtol=1e-3)
    assert jnp.allclose(result["att"], ref["att"], atol=1e-3, rtol=1e-3)
    assert result["output"].shape == (N * H * W, fea_dim)
    assert result["att"].shape == (N * H * W, mem_dim)

    print("KERNEL_OK")
</pallas_src>

<mosaic_0001>
module attributes {stable_mosaic.version = 11 : i64} {
  func.func @_memory_unit_kernel(%arg0: i32, %arg1: memref<256x32xf32, #tpu.memory_space<vmem>>, %arg2: memref<32x128xf32, #tpu.memory_space<vmem>>, %arg3: memref<128x32xf32, #tpu.memory_space<vmem>>, %arg4: memref<256x32xf32, #tpu.memory_space<vmem>>, %arg5: memref<256x128xf32, #tpu.memory_space<vmem>>) attributes {dimension_semantics = [#tpu.dimension_semantics<parallel>], iteration_bounds = array<i64: 2>, scalar_prefetch = 0 : i64, scratch_operands = 0 : i64, tpu.core_type = #tpu.core_type<tc>, window_params = [{transform_indices = @transform_0, window_bounds = array<i64: 256, 32>}, {pipeline_mode = #tpu.pipeline_mode<synchronous>, transform_indices = @transform_1, window_bounds = array<i64: 32, 128>}, {pipeline_mode = #tpu.pipeline_mode<synchronous>, transform_indices = @transform_2, window_bounds = array<i64: 128, 32>}, {transform_indices = @transform_3, window_bounds = array<i64: 256, 32>}, {transform_indices = @transform_4, window_bounds = array<i64: 256, 128>}]} {
    %c0 = arith.constant 0 : index
    %c0_0 = arith.constant 0 : index
    %0 = vector.load %arg1[%c0, %c0_0] : memref<256x32xf32, #tpu.memory_space<vmem>>, vector<256x32xf32>
    %c0_1 = arith.constant 0 : index
    %c0_2 = arith.constant 0 : index
    %1 = vector.load %arg2[%c0_1, %c0_2] : memref<32x128xf32, #tpu.memory_space<vmem>>, vector<32x128xf32>
    %cst = arith.constant dense<0.000000e+00> : vector<256x128xf32>
    %2 = tpu.matmul %0, %1, %cst {dimension_numbers = #tpu.dot_dimension_numbers<[1], [0], [0], [1], [0, 0, 1, 1], [], []>} : vector<256x32xf32>, vector<32x128xf32>, vector<256x128xf32> -> vector<256x128xf32>
    %cst_3 = arith.constant dense<0xFF800000> : vector<256xf32>
    %3 = vector.multi_reduction <maximumf>, %2, %cst_3 [1] : vector<256x128xf32> to vector<256xf32>
    %4 = vector.shape_cast %3 : vector<256xf32> to vector<256x1xf32>
    %5 = vector.broadcast %4 : vector<256x1xf32> to vector<256x128xf32>
    %6 = arith.subf %2, %5 : vector<256x128xf32>
    %7 = math.exp %6 : vector<256x128xf32>
    %cst_4 = arith.constant dense<0.000000e+00> : vector<256xf32>
    %8 = vector.multi_reduction <add>, %7, %cst_4 [1] : vector<256x128xf32> to vector<256xf32>
    %9 = vector.shape_cast %8 : vector<256xf32> to vector<256x1xf32>
    %10 = vector.broadcast %9 : vector<256x1xf32> to vector<256x128xf32>
    %11 = arith.divf %7, %10 : vector<256x128xf32>
    %cst_5 = arith.constant 2.500000e-03 : f32
    %12 = vector.broadcast %cst_5 : f32 to vector<256x128xf32>
    %13 = arith.cmpf ogt, %11, %12 : vector<256x128xf32>
    %cst_6 = arith.constant 0.000000e+00 : f32
    %14 = vector.broadcast %cst_6 : f32 to vector<256x128xf32>
    %15 = arith.select %13, %11, %14 : vector<256x128xi1>, vector<256x128xf32>
    %cst_7 = arith.constant dense<0.000000e+00> : vector<256xf32>
    %16 = vector.multi_reduction <add>, %15, %cst_7 [1] : vector<256x128xf32> to vector<256xf32>
    %17 = vector.shape_cast %16 : vector<256xf32> to vector<256x1xf32>
    %cst_8 = arith.constant 9.99999996E-13 : f32
    %18 = vector.broadcast %cst_8 : f32 to vector<256x1xf32>
    %19 = arith.maximumf %17, %18 : vector<256x1xf32>
    %20 = vector.broadcast %19 : vector<256x1xf32> to vector<256x128xf32>
    %21 = arith.divf %15, %20 : vector<256x128xf32>
    %c0_9 = arith.constant 0 : index
    %c0_10 = arith.constant 0 : index
    %22 = vector.load %arg3[%c0_9, %c0_10] : memref<128x32xf32, #tpu.memory_space<vmem>>, vector<128x32xf32>
    %cst_11 = arith.constant dense<0.000000e+00> : vector<256x32xf32>
    %23 = tpu.matmul %21, %22, %cst_11 {dimension_numbers = #tpu.dot_dimension_numbers<[1], [0], [0], [1], [0, 0, 1, 1], [], []>} : vector<256x128xf32>, vector<128x32xf32>, vector<256x32xf32> -> vector<256x32xf32>
    %c0_12 = arith.constant 0 : index
    %c0_13 = arith.constant 0 : index
    %24 = vector.load %arg4[%c0_12, %c0_13] : memref<256x32xf32, #tpu.memory_space<vmem>>, vector<256x32xf32>
    tpu.vector_store %arg4[%c0_12, %c0_13], %23 {strides = array<i32>} : memref<256x32xf32, #tpu.memory_space<vmem>>, vector<256x32xf32>,
    %c0_14 = arith.constant 0 : index
    %c0_15 = arith.constant 0 : index
    %25 = vector.load %arg5[%c0_14, %c0_15] : memref<256x128xf32, #tpu.memory_space<vmem>>, vector<256x128xf32>
    tpu.vector_store %arg5[%c0_14, %c0_15], %21 {strides = array<i32>} : memref<256x128xf32, #tpu.memory_space<vmem>>, vector<256x128xf32>,
    return
  }
  func.func @transform_0(%arg0: i32) -> (i32, i32) {
    %c0_i32 = arith.constant 0 : i32
    %c0_i32_0 = arith.constant 0 : i32
    return %arg0, %c0_i32 : i32, i32
  }
  func.func @transform_1(%arg0: i32) -> (i32, i32) {
    %c0_i32 = arith.constant 0 : i32
    %c0_i32_0 = arith.constant 0 : i32
    %c0_i32_1 = arith.constant 0 : i32
    return %c0_i32, %c0_i32_0 : i32, i32
  }
  func.func @transform_2(%arg0: i32) -> (i32, i32) {
    %c0_i32 = arith.constant 0 : i32
    %c0_i32_0 = arith.constant 0 : i32
    %c0_i32_1 = arith.constant 0 : i32
    return %c0_i32, %c0_i32_0 : i32, i32
  }
  func.func @transform_3(%arg0: i32) -> (i32, i32) {
    %c0_i32 = arith.constant 0 : i32
    %c0_i32_0 = arith.constant 0 : i32
    return %arg0, %c0_i32 : i32, i32
  }
  func.func @transform_4(%arg0: i32) -> (i32, i32) {
    %c0_i32 = arith.constant 0 : i32
    %c0_i32_0 = arith.constant 0 : i32
    return %arg0, %c0_i32 : i32, i32
  }
}

</mosaic_0001>

<llo_original>
// kernel: tpu_custom_call.1
$region0: #{tpu_custom_call.1}
  #allocation0 [shape = 'u32[]', space=smem, size = 0x4, offset = 0x4, fixed_abs, tag = 'smem constant byte address 0x4 - core index']
  #allocation1 [shape = 'u32[144,128]{1,0:T(1,128)}', space=vmem, size = 0x12000, scoped, tag = 'internal scratch']
  %s0 = inlined_call_operand.vmem [shape: f32[512,32], index: 0, kind: input, shape index: {}]
  %s1 = inlined_call_operand.vmem [shape: f32[32,128], index: 1, kind: input, shape index: {}]
  %s2 = inlined_call_operand.vmem [shape: f32[128,32], index: 2, kind: input, shape index: {}]
  %s3 = inlined_call_operand.vmem [shape: f32[512,32], index: 3, kind: output, shape index: {0}]
  %s4 = inlined_call_operand.hbm [shape: f32[512,128], index: 4, kind: output, shape index: {1}]
  %5 = xla_tuple %s3, %s4
  %s6 = sld [smem:[#allocation0]]
  $region53: #{tpu_custom_call.1} parent=0
    _
  %s8 = ssub.s32 1, %s6
  %s9 = scalar_select 0, %s8, %s6
  $region1: #{tpu_custom_call.1} parent=0
    #allocation2 [shape = 'u8[262144]{0}', space=vmem, size = 0x40000, scoped, tag = 'output window, operand 1']
    #allocation3 [shape = 's32[2]{0}', space=sflag, size = 0x8, scoped, tag = 'scoped memory for tpu_custom_call.1']
    %10 = vsyncpa [#allocation3], 0
    %s11 = scalar_lea.sflag [#allocation3], 1
    %12 = vsyncpa %s11, 0
    loop: start=0, step=1, limit=4
    $region2: #{tpu_custom_call.1} parent=1 // loop_pre_header
      _
    $region3: #{tpu_custom_call.1} parent=1 // loop_header
      %s14 = sphi 0, %s18
      %p15 = scmp.ge.s32.totalorder %s14, 4
      %s24 = sphi 0, %s26
      %s27 = sphi 0, %s24
      %s28 = sphi 0, %s27
      %s44 = sphi 0, %s28
      %s48 = sphi 0, %s48
      %s50 = sphi 0, %s48
      %s51 = sphi 0, %s50
      %s65 = sphi 0, %s51
      %s69 = sphi 0, %s69
      %s71 = sphi 0, %s69
      %s72 = sphi 0, %s71
      %s86 = sphi 0, %s72
      %s92 = sphi 0, %s94
      %s95 = sphi 0, %s92
      %s96 = sphi 0, %s95
      %s112 = sphi 0, %s96
      %s118 = sphi 0, %s120
      %s121 = sphi 0, %s118
      %s122 = sphi 0, %s121
      %s138 = sphi 0, %s122
    $region4: #{tpu_custom_call.1} parent=1 // loop_header_branch
      %17 = sbr.rel (%p15) target = $region8
    $region5: #{tpu_custom_call.1} parent=1 // loop_body
      %s19 = ssub.s32 %s14, 1
      %s20 = ssub.s32 %s14, 2
      %s21 = sadd.s32 %s14, 1
      %s22 = ssub.s32 %s14, %s21
      %p23 = scmp.eq.s32.totalorder %s22, 0
      %s25 = sadd.s32 %s24, 1
      %s26 = scalar_select %p23, %s24, %s25
      %p29 = pneg %p23
      %p30 = scmp.eq.s32.totalorder %s14, 1
      %p31 = por %p29, %p30
      %p32 = scmp.ne.s32.totalorder %s24, %s27
      %p33 = scmp.eq.s32.totalorder %s14, 0
      %p34 = por %p32, %p33
      %p35 = scmp.ne.s32.totalorder %s24, %s27
      %p36 = scmp.eq.s32.totalorder %s19, 1
      %p37 = por %p35, %p36
      %p38 = scmp.ne.s32.totalorder %s27, %s28
      %p39 = scmp.eq.s32.totalorder %s19, 0
      %p40 = por %p38, %p39
      %p41 = scmp.ne.s32.totalorder %s27, %s28
      %p42 = scmp.eq.s32.totalorder %s20, 1
      %p43 = por %p41, %p42
      %p45 = scmp.ne.s32.totalorder %s28, %s44
      %p46 = scmp.eq.s32.totalorder %s20, 0
      %p47 = por %p45, %p46
      %s49 = sadd.s32 %s48, 1
      %p52 = scmp.eq.s32.totalorder %s14, 1
      %p53 = scmp.ne.s32.totalorder %s48, %s50
      %p54 = scmp.eq.s32.totalorder %s14, 0
      %p55 = por %p53, %p54
      %p56 = scmp.ne.s32.totalorder %s48, %s50
      %p57 = scmp.eq.s32.totalorder %s19, 1
      %p58 = por %p56, %p57
      %p59 = scmp.ne.s32.totalorder %s50, %s51
      %p60 = scmp.eq.s32.totalorder %s19, 0
      %p61 = por %p59, %p60
      %p62 = scmp.ne.s32.totalorder %s50, %s51
      %p63 = scmp.eq.s32.totalorder %s20, 1
      %p64 = por %p62, %p63
      %p66 = scmp.ne.s32.totalorder %s51, %s65
      %p67 = scmp.eq.s32.totalorder %s20, 0
      %p68 = por %p66, %p67
      %s70 = sadd.s32 %s69, 1
      %p73 = scmp.eq.s32.totalorder %s14, 1
      %p74 = scmp.ne.s32.totalorder %s69, %s71
      %p75 = scmp.eq.s32.totalorder %s14, 0
      %p76 = por %p74, %p75
      %p77 = scmp.ne.s32.totalorder %s69, %s71
      %p78 = scmp.eq.s32.totalorder %s19, 1
      %p79 = por %p77, %p78
      %p80 = scmp.ne.s32.totalorder %s71, %s72
      %p81 = scmp.eq.s32.totalorder %s19, 0
      %p82 = por %p80, %p81
      %p83 = scmp.ne.s32.totalorder %s71, %s72
      %p84 = scmp.eq.s32.totalorder %s20, 1
      %p85 = por %p83, %p84
      %p87 = scmp.ne.s32.totalorder %s72, %s86
      %p88 = scmp.eq.s32.totalorder %s20, 0
      %p89 = por %p87, %p88
      %s90 = ssub.s32 %s14, %s21
      %p91 = scmp.eq.s32.totalorder %s90, 0
      %s93 = sadd.s32 %s92, 1
      %s94 = scalar_select %p91, %s92, %s93
      %p97 = pneg %p91
      %p98 = scmp.eq.s32.totalorder %s14, 1
      %p99 = por %p97, %p98
      %p100 = scmp.ne.s32.totalorder %s92, %s95
      %p101 = scmp.eq.s32.totalorder %s14, 0
      %p102 = por %p100, %p101
      %p103 = scmp.ne.s32.totalorder %s92, %s95
      %p104 = scmp.eq.s32.totalorder %s19, 1
      %p105 = por %p103, %p104
      %p106 = scmp.ne.s32.totalorder %s95, %s96
      %p107 = scmp.eq.s32.totalorder %s19, 0
      %p108 = por %p106, %p107
      %p109 = scmp.ne.s32.totalorder %s95, %s96
      %p110 = scmp.eq.s32.totalorder %s20, 1
      %p111 = por %p109, %p110
      %p113 = scmp.ne.s32.totalorder %s96, %s112
      %p114 = scmp.eq.s32.totalorder %s20, 0
      %p115 = por %p113, %p114
      %s116 = ssub.s32 %s14, %s21
      %p117 = scmp.eq.s32.totalorder %s116, 0
      %s119 = sadd.s32 %s118, 1
      %s120 = scalar_select %p117, %s118, %s119
      %p123 = pneg %p117
      %p124 = scmp.eq.s32.totalorder %s14, 1
      %p125 = por %p123, %p124
      %p126 = scmp.ne.s32.totalorder %s118, %s121
      %p127 = scmp.eq.s32.totalorder %s14, 0
      %p128 = por %p126, %p127
      %p129 = scmp.ne.s32.totalorder %s118, %s121
      %p130 = scmp.eq.s32.totalorder %s19, 1
      %p131 = por %p129, %p130
      %p132 = scmp.ne.s32.totalorder %s121, %s122
      %p133 = scmp.eq.s32.totalorder %s19, 0
      %p134 = por %p132, %p133
      %p135 = scmp.ne.s32.totalorder %s121, %s122
      %p136 = scmp.eq.s32.totalorder %s20, 1
      %p137 = por %p135, %p136
      %p139 = scmp.ne.s32.totalorder %s122, %s138
      %p140 = scmp.eq.s32.totalorder %s20, 0
      %p141 = por %p139, %p140
      %p142 = scmp.le.s32.totalorder 1, %s14
      %p143 = scmp.lt.s32.totalorder %s14, 3
      %p144 = pnand %p142, %p143
      %p145 = pneg %p144
      // Predicated region
      $region9: #{tpu_custom_call.1} parent=5 // pred_check
        _
      $region10: #{tpu_custom_call.1} parent=5 // pred_check_branch
        %147 = sbr.rel (%p144) target = $region12
      $region11: #{tpu_custom_call.1} parent=5 // pred_region
        %s148 = ssub.s32 %s14, 1
        // Predicated region
        $region13: #{tpu_custom_call.1} parent=11 // pred_check
          %p149 = pneg %p61
        $region14: #{tpu_custom_call.1} parent=11 // pred_check_branch
          %151 = sbr.rel (%p149) target = $region16
        $region15: #{tpu_custom_call.1} parent=11 // pred_region
          _
        $region16: #{tpu_custom_call.1} parent=11 // pred_fallthru
          _
        // Predicated region
        $region17: #{tpu_custom_call.1} parent=11 // pred_check
          %p152 = pneg %p82
        $region18: #{tpu_custom_call.1} parent=11 // pred_check_branch
          %154 = sbr.rel (%p152) target = $region20
        $region19: #{tpu_custom_call.1} parent=11 // pred_region
          _
        $region20: #{tpu_custom_call.1} parent=11 // pred_fallthru
          _
      $region12: #{tpu_custom_call.1} parent=5 // pred_fallthru
        _
      %p155 = scmp.lt.s32.totalorder %s14, 2
      // Predicated region
      $region21: #{tpu_custom_call.1} parent=5 // pred_check
        %p156 = pneg %p155
      $region22: #{tpu_custom_call.1} parent=5 // pred_check_branch
        %158 = sbr.rel (%p156) target = $region24
      $region23: #{tpu_custom_call.1} parent=5 // pred_region
        // Predicated region
        $region25: #{tpu_custom_call.1} parent=23 // pred_check
          %p159 = pneg %p34
        $region26: #{tpu_custom_call.1} parent=23 // pred_check_branch
          %161 = sbr.rel (%p159) target = $region28
        $region27: #{tpu_custom_call.1} parent=23 // pred_region
          %s162 = smul.u32 32, %s14
          %p163 = scmp.lt.s32.totalorder %s162, 63
          %s164 = scalar_select %p163, %s162, 63
          %s165 = smul.addr %s164, 8
          %s166 = scalar_lea.vmem %s0, %s165
          %s167 = smul.u32 32, %s14
        $region28: #{tpu_custom_call.1} parent=23 // pred_fallthru
          _
      $region24: #{tpu_custom_call.1} parent=5 // pred_fallthru
        _
      %p168 = scmp.le.s32.totalorder 1, %s14
      %p169 = scmp.lt.s32.totalorder %s14, 3
      %p170 = pnand %p168, %p169
      %p171 = pneg %p170
      // Predicated region
      $region29: #{tpu_custom_call.1} parent=5 // pred_check
        _
      $region30: #{tpu_custom_call.1} parent=5 // pred_check_branch
        %173 = sbr.rel (%p170) target = $region32
      $region31: #{tpu_custom_call.1} parent=5 // pred_region
        %s174 = ssub.s32 %s14, 1
        %s175 = smul.u32 32, %s19
        %p176 = scmp.lt.s32.totalorder %s175, 63
        %s177 = scalar_select %p176, %s175, 63
        %s178 = smul.addr %s177, 8
        %s179 = scalar_lea.vmem %s0, %s178
        %p180 = pneg %p40
        %p181 = pneg %p37
        %p182 = pneg %p61
        %p183 = pneg %p58
        %p184 = pneg %p82
        %p185 = pneg %p79
        %p186 = pneg %p108
        %p187 = pneg %p105
        %s188 = smul.u32 32, %s19
        %p189 = scmp.lt.s32.totalorder %s188, 63
        %s190 = scalar_select %p189, %s188, 63
        %s191 = smul.addr %s190, 8
        %s192 = scalar_lea.vmem %s3, %s191
        %p193 = pneg %p134
        %p194 = pneg %p131
        %s195 = sand.u32 %s121, 1
        %s196 = scalar_lea.sflag [#allocation3], %s195
        %s197 = sand.u32 %s121, 1
        %s198 = smul.addr %s197, 256
        %s199 = scalar_lea.vmem [#allocation2], %s198
        %s200 = smul.u32 32, %s19
        %p201 = scmp.lt.s32.totalorder %s200, 63
        %s202 = scalar_select %p201, %s200, 63
        %s203 = smul.addr %s202, 8
        %s204 = scalar_lea.vmem %s0, %s203
        %s205 = smul.u32 32, %s19
        %s206 = smul.u32 32, %s19
        %p207 = scmp.lt.s32.totalorder %s206, 63
        %s208 = scalar_select %p207, %s206, 63
        %s209 = smul.addr %s208, 8
        %s210 = scalar_lea.vmem %s3, %s209
        %s211 = smul.u32 32, %s19
        %s212 = smul.u32 32, %s19
        %v213 = vld [vmem:[%s204] sm:$0xff]
        %v214 = vld [vmem:[%s204 + $0x8] sm:$0xff]
        %v215 = vld [vmem:[%s204 + $0x10] sm:$0xff]
        %v216 = vld [vmem:[%s204 + $0x18] sm:$0xff]
        %v217 = vld [vmem:[%s204 + $0x20] sm:$0xff]
        %v218 = vld [vmem:[%s204 + $0x28] sm:$0xff]
        %v219 = vld [vmem:[%s204 + $0x30] sm:$0xff]
        %v220 = vld [vmem:[%s204 + $0x38] sm:$0xff]
        %v221 = vld [vmem:[%s204 + $0x40] sm:$0xff]
        %v222 = vld [vmem:[%s204 + $0x48] sm:$0xff]
        %v223 = vld [vmem:[%s204 + $0x50] sm:$0xff]
        %v224 = vld [vmem:[%s204 + $0x58] sm:$0xff]
        %v225 = vld [vmem:[%s204 + $0x60] sm:$0xff]
        %v226 = vld [vmem:[%s204 + $0x68] sm:$0xff]
        %v227 = vld [vmem:[%s204 + $0x70] sm:$0xff]
        %v228 = vld [vmem:[%s204 + $0x78] sm:$0xff]
        %v229 = vld [vmem:[%s204 + $0x80] sm:$0xff]
        %v230 = vld [vmem:[%s204 + $0x88] sm:$0xff]
        %v231 = vld [vmem:[%s204 + $0x90] sm:$0xff]
        %v232 = vld [vmem:[%s204 + $0x98] sm:$0xff]
        %v233 = vld [vmem:[%s204 + $0xa0] sm:$0xff]
        %v234 = vld [vmem:[%s204 + $0xa8] sm:$0xff]
        %v235 = vld [vmem:[%s204 + $0xb0] sm:$0xff]
        %v236 = vld [vmem:[%s204 + $0xb8] sm:$0xff]
        %v237 = vld [vmem:[%s204 + $0xc0] sm:$0xff]
        %v238 = vld [vmem:[%s204 + $0xc8] sm:$0xff]
        %v239 = vld [vmem:[%s204 + $0xd0] sm:$0xff]
        %v240 = vld [vmem:[%s204 + $0xd8] sm:$0xff]
        %v241 = vld [vmem:[%s204 + $0xe0] sm:$0xff]
        %v242 = vld [vmem:[%s204 + $0xe8] sm:$0xff]
        %v243 = vld [vmem:[%s204 + $0xf0] sm:$0xff]
        %v244 = vld [vmem:[%s204 + $0xf8] sm:$0xff]
        %v245 = vld [vmem:[%s1] sm:$0xff]
        %v246 = vld [vmem:[%s1 + $0x8] sm:$0xff]
        %v247 = vld [vmem:[%s1 + $0x10] sm:$0xff]
        %v248 = vld [vmem:[%s1 + $0x18] sm:$0xff]
        %vm249 = vcmask 261120
        %v251 = vsel %vm249, %v213, 0
        %v254 = vsel %vm249, %v214, 0
        %v257 = vsel %vm249, %v215, 0
        %v260 = vsel %vm249, %v216, 0
        %v263 = vsel %vm249, %v217, 0
        %v266 = vsel %vm249, %v218, 0
        %v269 = vsel %vm249, %v219, 0
        %v272 = vsel %vm249, %v220, 0
        %v275 = vsel %vm249, %v221, 0
        %v278 = vsel %vm249, %v222, 0
        %v281 = vsel %vm249, %v223, 0
        %v284 = vsel %vm249, %v224, 0
        %v287 = vsel %vm249, %v225, 0
        %v290 = vsel %vm249, %v226, 0
        %v293 = vsel %vm249, %v227, 0
        %v296 = vsel %vm249, %v228, 0
        %v299 = vsel %vm249, %v229, 0
        %v302 = vsel %vm249, %v230, 0
        %v305 = vsel %vm249, %v231, 0
        %v308 = vsel %vm249, %v232, 0
        %v311 = vsel %vm249, %v233, 0
        %v314 = vsel %vm249, %v234, 0
        %v317 = vsel %vm249, %v235, 0
        %v320 = vsel %vm249, %v236, 0
        %v323 = vsel %vm249, %v237, 0
        %v326 = vsel %vm249, %v238, 0
        %v329 = vsel %vm249, %v239, 0
        %v332 = vsel %vm249, %v240, 0
        %v335 = vsel %vm249, %v241, 0
        %v338 = vsel %vm249, %v242, 0
        %v341 = vsel %vm249, %v243, 0
        %v344 = vsel %vm249, %v244, 0
        %346 = vmatprep.subr.mxu0 0.0
        %347 = vmatpush1.msra.mxu0 0.0
        %348 = vmatprep.subr.mxu0 0.0
        %349 = vmatpush1.msra.mxu0 0.0
        %350 = vmatprep.subr.mxu0 0.0
        %351 = vmatpush1.msra.mxu0 0.0
        %352 = vmatprep.subr.mxu0 0.0
        %353 = vmatpush1.msra.mxu0 0.0
        %354 = vmatprep.subr.mxu0 0.0
        %355 = vmatpush1.msra.mxu0 0.0
        %356 = vmatprep.subr.mxu0 0.0
        %357 = vmatpush1.msra.mxu0 0.0
        %358 = vmatprep.subr.mxu0 0.0
        %359 = vmatpush1.msra.mxu0 0.0
        %360 = vmatprep.subr.mxu0 0.0
        %361 = vmatpush1.msra.mxu0 0.0
        %362 = vmatprep.subr.mxu0 0.0
        %363 = vmatpush1.msra.mxu0 0.0
        %364 = vmatprep.subr.mxu0 0.0
        %365 = vmatpush1.msra.mxu0 0.0
        %366 = vmatprep.subr.mxu0 0.0
        %367 = vmatpush1.msra.mxu0 0.0
        %368 = vmatprep.subr.mxu0 0.0
        %369 = vmatpush1.msra.mxu0 0.0
        %370 = vmatprep.subr.mxu0 0.0
        %371 = vmatpush1.msra.mxu0 %v248
        %372 = vmatprep.subr.mxu0 0.0
        %373 = vmatpush1.msra.mxu0 %v247
        %374 = vmatprep.subr.mxu0 0.0
        %375 = vmatpush1.msra.mxu0 %v246
        %376 = vmatprep.subr.mxu0 0.0
        %377 = vmatpush1.msra.mxu0 %v245
        %378 = vmatprep.subr.mxu0 0.0
        %379 = vmatpush2.msra.mxu0 0.0
        %380 = vmatprep.subr.mxu0 0.0
        %381 = vmatpush2.msra.mxu0 0.0
        %382 = vmatprep.subr.mxu0 0.0
        %383 = vmatpush2.msra.mxu0 0.0
        %384 = vmatprep.subr.mxu0 0.0
        %385 = vmatpush2.msra.mxu0 0.0
        %386 = vmatprep.subr.mxu0 0.0
        %387 = vmatpush2.msra.mxu0 0.0
        %388 = vmatprep.subr.mxu0 0.0
        %389 = vmatpush2.msra.mxu0 0.0
        %390 = vmatprep.subr.mxu0 0.0
        %391 = vmatpush2.msra.mxu0 0.0
        %392 = vmatprep.subr.mxu0 0.0
        %393 = vmatpush2.msra.mxu0 0.0
        %394 = vmatprep.subr.mxu0 0.0
        %395 = vmatpush2.msra.mxu0 0.0
        %396 = vmatprep.subr.mxu0 0.0
        %397 = vmatpush2.msra.mxu0 0.0
        %398 = vmatprep.subr.mxu0 0.0
        %399 = vmatpush2.msra.mxu0 0.0
        %400 = vmatprep.subr.mxu0 0.0
        %401 = vmatpush2.msra.mxu0 0.0
        %402 = vmatprep.subr.mxu0 0.0
        %403 = vmatpush2.msra.mxu0 0.0
        %404 = vmatprep.subr.mxu0 0.0
        %405 = vmatpush2.msra.mxu0 0.0
        %406 = vmatprep.subr.mxu0 0.0
        %407 = vmatpush2.msra.mxu0 0.0
        %408 = vmatprep.subr.mxu0 0.0
        %409 = vmatpush2.msra.mxu0 0.0
        %410 = vmatprep.mubr.f32.mxu0 0.0
        %411 = vmatmul.mubr.f32.gmra.mxu0 %v251
        %v412 = vpop.f32.mrf.mxu0
        %v413 = vadd.f32 0.0, %v412
        %v414 = vpop.f32.mrf.mxu0
        %415 = vmatprep.mubr.f32.mxu0 0.0
        %416 = vmatmul.mubr.f32.gmra.mxu0 %v254
        %v417 = vpop.f32.mrf.mxu0
        %v418 = vadd.f32 0.0, %v417
        %v419 = vpop.f32.mrf.mxu0
        %420 = vmatprep.mubr.f32.mxu0 0.0
        %421 = vmatmul.mubr.f32.gmra.mxu0 %v257
        %v422 = vpop.f32.mrf.mxu0
        %v423 = vadd.f32 0.0, %v422
        %v424 = vpop.f32.mrf.mxu0
        %425 = vmatprep.mubr.f32.mxu0 0.0
        %426 = vmatmul.mubr.f32.gmra.mxu0 %v260
        %v427 = vpop.f32.mrf.mxu0
        %v428 = vadd.f32 0.0, %v427
        %v429 = vpop.f32.mrf.mxu0
        %430 = vmatprep.mubr.f32.mxu0 0.0
        %431 = vmatmul.mubr.f32.gmra.mxu0 %v263
        %v432 = vpop.f32.mrf.mxu0
        %v433 = vadd.f32 0.0, %v432
        %v434 = vpop.f32.mrf.mxu0
        %435 = vmatprep.mubr.f32.mxu0 0.0
        %436 = vmatmul.mubr.f32.gmra.mxu0 %v266
        %v437 = vpop.f32.mrf.mxu0
        %v438 = vadd.f32 0.0, %v437
        %v439 = vpop.f32.mrf.mxu0
        %440 = vmatprep.mubr.f32.mxu0 0.0
        %441 = vmatmul.mubr.f32.gmra.mxu0 %v269
        %v442 = vpop.f32.mrf.mxu0
        %v443 = vadd.f32 0.0, %v442
        %v444 = vpop.f32.mrf.mxu0
        %445 = vmatprep.mubr.f32.mxu0 0.0
        %446 = vmatmul.mubr.f32.gmra.mxu0 %v272
        %v447 = vpop.f32.mrf.mxu0
        %v448 = vadd.f32 0.0, %v447
        %v449 = vpop.f32.mrf.mxu0
        %450 = vmatprep.mubr.f32.mxu0 0.0
        %451 = vmatmul.mubr.f32.gmra.mxu0 %v275
        %v452 = vpop.f32.mrf.mxu0
        %v453 = vadd.f32 0.0, %v452
        %v454 = vpop.f32.mrf.mxu0
        %455 = vmatprep.mubr.f32.mxu0 0.0
        %456 = vmatmul.mubr.f32.gmra.mxu0 %v278
        %v457 = vpop.f32.mrf.mxu0
        %v458 = vadd.f32 0.0, %v457
        %v459 = vpop.f32.mrf.mxu0
        %460 = vmatprep.mubr.f32.mxu0 0.0
        %461 = vmatmul.mubr.f32.gmra.mxu0 %v281
        %v462 = vpop.f32.mrf.mxu0
        %v463 = vadd.f32 0.0, %v462
        %v464 = vpop.f32.mrf.mxu0
        %465 = vmatprep.mubr.f32.mxu0 0.0
        %466 = vmatmul.mubr.f32.gmra.mxu0 %v284
        %v467 = vpop.f32.mrf.mxu0
        %v468 = vadd.f32 0.0, %v467
        %v469 = vpop.f32.mrf.mxu0
        %470 = vmatprep.mubr.f32.mxu0 0.0
        %471 = vmatmul.mubr.f32.gmra.mxu0 %v287
        %v472 = vpop.f32.mrf.mxu0
        %v473 = vadd.f32 0.0, %v472
        %v474 = vpop.f32.mrf.mxu0
        %475 = vmatprep.mubr.f32.mxu0 0.0
        %476 = vmatmul.mubr.f32.gmra.mxu0 %v290
        %v477 = vpop.f32.mrf.mxu0
        %v478 = vadd.f32 0.0, %v477
        %v479 = vpop.f32.mrf.mxu0
        %480 = vmatprep.mubr.f32.mxu0 0.0
        %481 = vmatmul.mubr.f32.gmra.mxu0 %v293
        %v482 = vpop.f32.mrf.mxu0
        %v483 = vadd.f32 0.0, %v482
        %v484 = vpop.f32.mrf.mxu0
        %485 = vmatprep.mubr.f32.mxu0 0.0
        %486 = vmatmul.mubr.f32.gmra.mxu0 %v296
        %v487 = vpop.f32.mrf.mxu0
        %v488 = vadd.f32 0.0, %v487
        %v489 = vpop.f32.mrf.mxu0
        %490 = vmatprep.mubr.f32.mxu0 0.0
        %491 = vmatmul.mubr.f32.gmra.mxu0 %v299
        %v492 = vpop.f32.mrf.mxu0
        %v493 = vadd.f32 0.0, %v492
        %v494 = vpop.f32.mrf.mxu0
        %495 = vmatprep.mubr.f32.mxu0 0.0
        %496 = vmatmul.mubr.f32.gmra.mxu0 %v302
        %v497 = vpop.f32.mrf.mxu0
        %v498 = vadd.f32 0.0, %v497
        %v499 = vpop.f32.mrf.mxu0
        %500 = vmatprep.mubr.f32.mxu0 0.0
        %501 = vmatmul.mubr.f32.gmra.mxu0 %v305
        %v502 = vpop.f32.mrf.mxu0
        %v503 = vadd.f32 0.0, %v502
        %v504 = vpop.f32.mrf.mxu0
        %505 = vmatprep.mubr.f32.mxu0 0.0
        %506 = vmatmul.mubr.f32.gmra.mxu0 %v308
        %v507 = vpop.f32.mrf.mxu0
        %v508 = vadd.f32 0.0, %v507
        %v509 = vpop.f32.mrf.mxu0
        %510 = vmatprep.mubr.f32.mxu0 0.0
        %511 = vmatmul.mubr.f32.gmra.mxu0 %v311
        %v512 = vpop.f32.mrf.mxu0
        %v513 = vadd.f32 0.0, %v512
        %v514 = vpop.f32.mrf.mxu0
        %515 = vmatprep.mubr.f32.mxu0 0.0
        %516 = vmatmul.mubr.f32.gmra.mxu0 %v314
        %v517 = vpop.f32.mrf.mxu0
        %v518 = vadd.f32 0.0, %v517
        %v519 = vpop.f32.mrf.mxu0
        %520 = vmatprep.mubr.f32.mxu0 0.0
        %521 = vmatmul.mubr.f32.gmra.mxu0 %v317
        %v522 = vpop.f32.mrf.mxu0
        %v523 = vadd.f32 0.0, %v522
        %v524 = vpop.f32.mrf.mxu0
        %525 = vmatprep.mubr.f32.mxu0 0.0
        %526 = vmatmul.mubr.f32.gmra.mxu0 %v320
        %v527 = vpop.f32.mrf.mxu0
        %v528 = vadd.f32 0.0, %v527
        %v529 = vpop.f32.mrf.mxu0
        %530 = vmatprep.mubr.f32.mxu0 0.0
        %531 = vmatmul.mubr.f32.gmra.mxu0 %v323
        %v532 = vpop.f32.mrf.mxu0
        %v533 = vadd.f32 0.0, %v532
        %v534 = vpop.f32.mrf.mxu0
        %535 = vmatprep.mubr.f32.mxu0 0.0
        %536 = vmatmul.mubr.f32.gmra.mxu0 %v326
        %v537 = vpop.f32.mrf.mxu0
        %v538 = vadd.f32 0.0, %v537
        %v539 = vpop.f32.mrf.mxu0
        %540 = vmatprep.mubr.f32.mxu0 0.0
        %541 = vmatmul.mubr.f32.gmra.mxu0 %v329
        %v542 = vpop.f32.mrf.mxu0
        %v543 = vadd.f32 0.0, %v542
        %v544 = vpop.f32.mrf.mxu0
        %545 = vmatprep.mubr.f32.mxu0 0.0
        %546 = vmatmul.mubr.f32.gmra.mxu0 %v332
        %v547 = vpop.f32.mrf.mxu0
        %v548 = vadd.f32 0.0, %v547
        %v549 = vpop.f32.mrf.mxu0
        %550 = vmatprep.mubr.f32.mxu0 0.0
        %551 = vmatmul.mubr.f32.gmra.mxu0 %v335
        %v552 = vpop.f32.mrf.mxu0
        %v553 = vadd.f32 0.0, %v552
        %v554 = vpop.f32.mrf.mxu0
        %555 = vmatprep.mubr.f32.mxu0 0.0
        %556 = vmatmul.mubr.f32.gmra.mxu0 %v338
        %v557 = vpop.f32.mrf.mxu0
        %v558 = vadd.f32 0.0, %v557
        %v559 = vpop.f32.mrf.mxu0
        %560 = vmatprep.mubr.f32.mxu0 0.0
        %561 = vmatmul.mubr.f32.gmra.mxu0 %v341
        %v562 = vpop.f32.mrf.mxu0
        %v563 = vadd.f32 0.0, %v562
        %v564 = vpop.f32.mrf.mxu0
        %565 = vmatprep.mubr.f32.mxu0 0.0
        %566 = vmatmul.mubr.f32.gmra.mxu0 %v344
        %v567 = vpop.f32.mrf.mxu0
        %v568 = vadd.f32 0.0, %v567
        %v569 = vpop.f32.mrf.mxu0
        %570 = vdwg.mxu0
        %571 = vmax.xlane.f32.xlu0 %v413
        %v572 = vpop.xlane.xlu0 %571
        %573 = vmax.xlane.f32.xlu0 %v418
        %v574 = vpop.xlane.xlu0 %573
        %575 = vmax.xlane.f32.xlu0 %v423
        %v576 = vpop.xlane.xlu0 %575
        %577 = vmax.xlane.f32.xlu0 %v428
        %v578 = vpop.xlane.xlu0 %577
        %579 = vmax.xlane.f32.xlu0 %v433
        %v580 = vpop.xlane.xlu0 %579
        %581 = vmax.xlane.f32.xlu0 %v438
        %v582 = vpop.xlane.xlu0 %581
        %583 = vmax.xlane.f32.xlu0 %v443
        %v584 = vpop.xlane.xlu0 %583
        %585 = vmax.xlane.f32.xlu0 %v448
        %v586 = vpop.xlane.xlu0 %585
        %587 = vmax.xlane.f32.xlu0 %v453
        %v588 = vpop.xlane.xlu0 %587
        %589 = vmax.xlane.f32.xlu0 %v458
        %v590 = vpop.xlane.xlu0 %589
        %591 = vmax.xlane.f32.xlu0 %v463
        %v592 = vpop.xlane.xlu0 %591
        %593 = vmax.xlane.f32.xlu0 %v468
        %v594 = vpop.xlane.xlu0 %593
        %595 = vmax.xlane.f32.xlu0 %v473
        %v596 = vpop.xlane.xlu0 %595
        %597 = vmax.xlane.f32.xlu0 %v478
        %v598 = vpop.xlane.xlu0 %597
        %599 = vmax.xlane.f32.xlu0 %v483
        %v600 = vpop.xlane.xlu0 %599
        %601 = vmax.xlane.f32.xlu0 %v488
        %v602 = vpop.xlane.xlu0 %601
        %603 = vmax.xlane.f32.xlu0 %v493
        %v604 = vpop.xlane.xlu0 %603
        %605 = vmax.xlane.f32.xlu0 %v498
        %v606 = vpop.xlane.xlu0 %605
        %607 = vmax.xlane.f32.xlu0 %v503
        %v608 = vpop.xlane.xlu0 %607
        %609 = vmax.xlane.f32.xlu0 %v508
        %v610 = vpop.xlane.xlu0 %609
        %611 = vmax.xlane.f32.xlu0 %v513
        %v612 = vpop.xlane.xlu0 %611
        %613 = vmax.xlane.f32.xlu0 %v518
        %v614 = vpop.xlane.xlu0 %613
        %615 = vmax.xlane.f32.xlu0 %v523
        %v616 = vpop.xlane.xlu0 %615
        %617 = vmax.xlane.f32.xlu0 %v528
        %v618 = vpop.xlane.xlu0 %617
        %619 = vmax.xlane.f32.xlu0 %v533
        %v620 = vpop.xlane.xlu0 %619
        %621 = vmax.xlane.f32.xlu0 %v538
        %v622 = vpop.xlane.xlu0 %621
        %623 = vmax.xlane.f32.xlu0 %v543
        %v624 = vpop.xlane.xlu0 %623
        %625 = vmax.xlane.f32.xlu0 %v548
        %v626 = vpop.xlane.xlu0 %625
        %627 = vmax.xlane.f32.xlu0 %v553
        %v628 = vpop.xlane.xlu0 %627
        %629 = vmax.xlane.f32.xlu0 %v558
        %v630 = vpop.xlane.xlu0 %629
        %631 = vmax.xlane.f32.xlu0 %v563
        %v632 = vpop.xlane.xlu0 %631
        %633 = vmax.xlane.f32.xlu0 %v568
        %v634 = vpop.xlane.xlu0 %633
        %v635 = vsub.f32 %v413, %v572
        %v636 = vsub.f32 %v418, %v574
        %v637 = vsub.f32 %v423, %v576
        %v638 = vsub.f32 %v428, %v578
        %v639 = vsub.f32 %v433, %v580
        %v640 = vsub.f32 %v438, %v582
        %v641 = vsub.f32 %v443, %v584
        %v642 = vsub.f32 %v448, %v586
        %v643 = vsub.f32 %v453, %v588
        %v644 = vsub.f32 %v458, %v590
        %v645 = vsub.f32 %v463, %v592
        %v646 = vsub.f32 %v468, %v594
        %v647 = vsub.f32 %v473, %v596
        %v648 = vsub.f32 %v478, %v598
        %v649 = vsub.f32 %v483, %v600
        %v650 = vsub.f32 %v488, %v602
        %v651 = vsub.f32 %v493, %v604
        %v652 = vsub.f32 %v498, %v606
        %v653 = vsub.f32 %v503, %v608
        %v654 = vsub.f32 %v508, %v610
        %v655 = vsub.f32 %v513, %v612
        %v656 = vsub.f32 %v518, %v614
        %v657 = vsub.f32 %v523, %v616
        %v658 = vsub.f32 %v528, %v618
        %v659 = vsub.f32 %v533, %v620
        %v660 = vsub.f32 %v538, %v622
        %v661 = vsub.f32 %v543, %v624
        %v662 = vsub.f32 %v548, %v626
        %v663 = vsub.f32 %v553, %v628
        %v664 = vsub.f32 %v558, %v630
        %v665 = vsub.f32 %v563, %v632
        %v666 = vsub.f32 %v568, %v634
        %v667 = vmul.f32 %v635, 1.442695
        %v668 = vpow.pop %v667
        %v669 = vmul.f32 %v636, 1.442695
        %v670 = vpow.pop %v669
        %v671 = vmul.f32 %v637, 1.442695
        %v672 = vpow.pop %v671
        %v673 = vmul.f32 %v638, 1.442695
        %v674 = vpow.pop %v673
        %v675 = vmul.f32 %v639, 1.442695
        %v676 = vpow.pop %v675
        %v677 = vmul.f32 %v640, 1.442695
        %v678 = vpow.pop %v677
        %v679 = vmul.f32 %v641, 1.442695
        %v680 = vpow.pop %v679
        %v681 = vmul.f32 %v642, 1.442695
        %v682 = vpow.pop %v681
        %v683 = vmul.f32 %v643, 1.442695
        %v684 = vpow.pop %v683
        %v685 = vmul.f32 %v644, 1.442695
        %v686 = vpow.pop %v685
        %v687 = vmul.f32 %v645, 1.442695
        %v688 = vpow.pop %v687
        %v689 = vmul.f32 %v646, 1.442695
        %v690 = vpow.pop %v689
        %v691 = vmul.f32 %v647, 1.442695
        %v692 = vpow.pop %v691
        %v693 = vmul.f32 %v648, 1.442695
        %v694 = vpow.pop %v693
        %v695 = vmul.f32 %v649, 1.442695
        %v696 = vpow.pop %v695
        %v697 = vmul.f32 %v650, 1.442695
        %v698 = vpow.pop %v697
        %v699 = vmul.f32 %v651, 1.442695
        %v700 = vpow.pop %v699
        %v701 = vmul.f32 %v652, 1.442695
        %v702 = vpow.pop %v701
        %v703 = vmul.f32 %v653, 1.442695
        %v704 = vpow.pop %v703
        %v705 = vmul.f32 %v654, 1.442695
        %v706 = vpow.pop %v705
        %v707 = vmul.f32 %v655, 1.442695
        %v708 = vpow.pop %v707
        %v709 = vmul.f32 %v656, 1.442695
        %v710 = vpow.pop %v709
        %v711 = vmul.f32 %v657, 1.442695
        %v712 = vpow.pop %v711
        %v713 = vmul.f32 %v658, 1.442695
        %v714 = vpow.pop %v713
        %v715 = vmul.f32 %v659, 1.442695
        %v716 = vpow.pop %v715
        %v717 = vmul.f32 %v660, 1.442695
        %v718 = vpow.pop %v717
        %v719 = vmul.f32 %v661, 1.442695
        %v720 = vpow.pop %v719
        %v721 = vmul.f32 %v662, 1.442695
        %v722 = vpow.pop %v721
        %v723 = vmul.f32 %v663, 1.442695
        %v724 = vpow.pop %v723
        %v725 = vmul.f32 %v664, 1.442695
        %v726 = vpow.pop %v725
        %v727 = vmul.f32 %v665, 1.442695
        %v728 = vpow.pop %v727
        %v729 = vmul.f32 %v666, 1.442695
        %v730 = vpow.pop %v729
        %731 = vadd.xlane.f32.xlu0 %v668
        %v732 = vpop.xlane.xlu0 %731
        %733 = vadd.xlane.f32.xlu0 %v670
        %v734 = vpop.xlane.xlu0 %733
        %735 = vadd.xlane.f32.xlu0 %v672
        %v736 = vpop.xlane.xlu0 %735
        %737 = vadd.xlane.f32.xlu0 %v674
        %v738 = vpop.xlane.xlu0 %737
        %739 = vadd.xlane.f32.xlu0 %v676
        %v740 = vpop.xlane.xlu0 %739
        %741 = vadd.xlane.f32.xlu0 %v678
        %v742 = vpop.xlane.xlu0 %741
        %743 = vadd.xlane.f32.xlu0 %v680
        %v744 = vpop.xlane.xlu0 %743
        %745 = vadd.xlane.f32.xlu0 %v682
        %v746 = vpop.xlane.xlu0 %745
        %747 = vadd.xlane.f32.xlu0 %v684
        %v748 = vpop.xlane.xlu0 %747
        %749 = vadd.xlane.f32.xlu0 %v686
        %v750 = vpop.xlane.xlu0 %749
        %751 = vadd.xlane.f32.xlu0 %v688
        %v752 = vpop.xlane.xlu0 %751
        %753 = vadd.xlane.f32.xlu0 %v690
        %v754 = vpop.xlane.xlu0 %753
        %755 = vadd.xlane.f32.xlu0 %v692
        %v756 = vpop.xlane.xlu0 %755
        %757 = vadd.xlane.f32.xlu0 %v694
        %v758 = vpop.xlane.xlu0 %757
        %759 = vadd.xlane.f32.xlu0 %v696
        %v760 = vpop.xlane.xlu0 %759
        %761 = vadd.xlane.f32.xlu0 %v698
        %v762 = vpop.xlane.xlu0 %761
        %763 = vadd.xlane.f32.xlu0 %v700
        %v764 = vpop.xlane.xlu0 %763
        %765 = vadd.xlane.f32.xlu0 %v702
        %v766 = vpop.xlane.xlu0 %765
        %767 = vadd.xlane.f32.xlu0 %v704
        %v768 = vpop.xlane.xlu0 %767
        %769 = vadd.xlane.f32.xlu0 %v706
        %v770 = vpop.xlane.xlu0 %769
        %771 = vadd.xlane.f32.xlu0 %v708
        %v772 = vpop.xlane.xlu0 %771
        %773 = vadd.xlane.f32.xlu0 %v710
        %v774 = vpop.xlane.xlu0 %773
        %775 = vadd.xlane.f32.xlu0 %v712
        %v776 = vpop.xlane.xlu0 %775
        %777 = vadd.xlane.f32.xlu0 %v714
        %v778 = vpop.xlane.xlu0 %777
        %779 = vadd.xlane.f32.xlu0 %v716
        %v780 = vpop.xlane.xlu0 %779
        %781 = vadd.xlane.f32.xlu0 %v718
        %v782 = vpop.xlane.xlu0 %781
        %783 = vadd.xlane.f32.xlu0 %v720
        %v784 = vpop.xlane.xlu0 %783
        %785 = vadd.xlane.f32.xlu0 %v722
        %v786 = vpop.xlane.xlu0 %785
        %787 = vadd.xlane.f32.xlu0 %v724
        %v788 = vpop.xlane.xlu0 %787
        %789 = vadd.xlane.f32.xlu0 %v726
        %v790 = vpop.xlane.xlu0 %789
        %791 = vadd.xlane.f32.xlu0 %v728
        %v792 = vpop.xlane.xlu0 %791
        %793 = vadd.xlane.f32.xlu0 %v730
        %v794 = vpop.xlane.xlu0 %793
        %v795 = vrcp.pop %v732
        %v796 = vmul.f32 %v668, %v795
        %v797 = vrcp.pop %v734
        %v798 = vmul.f32 %v670, %v797
        %v799 = vrcp.pop %v736
        %v800 = vmul.f32 %v672, %v799
        %v801 = vrcp.pop %v738
        %v802 = vmul.f32 %v674, %v801
        %v803 = vrcp.pop %v740
        %v804 = vmul.f32 %v676, %v803
        %v805 = vrcp.pop %v742
        %v806 = vmul.f32 %v678, %v805
        %v807 = vrcp.pop %v744
        %v808 = vmul.f32 %v680, %v807
        %v809 = vrcp.pop %v746
        %v810 = vmul.f32 %v682, %v809
        %v811 = vrcp.pop %v748
        %v812 = vmul.f32 %v684, %v811
        %v813 = vrcp.pop %v750
        %v814 = vmul.f32 %v686, %v813
        %v815 = vrcp.pop %v752
        %v816 = vmul.f32 %v688, %v815
        %v817 = vrcp.pop %v754
        %v818 = vmul.f32 %v690, %v817
        %v819 = vrcp.pop %v756
        %v820 = vmul.f32 %v692, %v819
        %v821 = vrcp.pop %v758
        %v822 = vmul.f32 %v694, %v821
        %v823 = vrcp.pop %v760
        %v824 = vmul.f32 %v696, %v823
        %v825 = vrcp.pop %v762
        %v826 = vmul.f32 %v698, %v825
        %v827 = vrcp.pop %v764
        %v828 = vmul.f32 %v700, %v827
        %v829 = vrcp.pop %v766
        %v830 = vmul.f32 %v702, %v829
        %v831 = vrcp.pop %v768
        %v832 = vmul.f32 %v704, %v831
        %v833 = vrcp.pop %v770
        %v834 = vmul.f32 %v706, %v833
        %v835 = vrcp.pop %v772
        %v836 = vmul.f32 %v708, %v835
        %v837 = vrcp.pop %v774
        %v838 = vmul.f32 %v710, %v837
        %v839 = vrcp.pop %v776
        %v840 = vmul.f32 %v712, %v839
        %v841 = vrcp.pop %v778
        %v842 = vmul.f32 %v714, %v841
        %v843 = vrcp.pop %v780
        %v844 = vmul.f32 %v716, %v843
        %v845 = vrcp.pop %v782
        %v846 = vmul.f32 %v718, %v845
        %v847 = vrcp.pop %v784
        %v848 = vmul.f32 %v720, %v847
        %v849 = vrcp.pop %v786
        %v850 = vmul.f32 %v722, %v849
        %v851 = vrcp.pop %v788
        %v852 = vmul.f32 %v724, %v851
        %v853 = vrcp.pop %v790
        %v854 = vmul.f32 %v726, %v853
        %v855 = vrcp.pop %v792
        %v856 = vmul.f32 %v728, %v855
        %v857 = vrcp.pop %v794
        %v858 = vmul.f32 %v730, %v857
        %vm859 = vcmp.gt.f32.partialorder %v796, 0.0025
        %vm860 = vcmp.gt.f32.partialorder %v798, 0.0025
        %vm861 = vcmp.gt.f32.partialorder %v800, 0.0025
        %vm862 = vcmp.gt.f32.partialorder %v802, 0.0025
        %vm863 = vcmp.gt.f32.partialorder %v804, 0.0025
        %vm864 = vcmp.gt.f32.partialorder %v806, 0.0025
        %vm865 = vcmp.gt.f32.partialorder %v808, 0.0025
        %vm866 = vcmp.gt.f32.partialorder %v810, 0.0025
        %vm867 = vcmp.gt.f32.partialorder %v812, 0.0025
        %vm868 = vcmp.gt.f32.partialorder %v814, 0.0025
        %vm869 = vcmp.gt.f32.partialorder %v816, 0.0025
        %vm870 = vcmp.gt.f32.partialorder %v818, 0.0025
        %vm871 = vcmp.gt.f32.partialorder %v820, 0.0025
        %vm872 = vcmp.gt.f32.partialorder %v822, 0.0025
        %vm873 = vcmp.gt.f32.partialorder %v824, 0.0025
        %vm874 = vcmp.gt.f32.partialorder %v826, 0.0025
        %vm875 = vcmp.gt.f32.partialorder %v828, 0.0025
        %vm876 = vcmp.gt.f32.partialorder %v830, 0.0025
        %vm877 = vcmp.gt.f32.partialorder %v832, 0.0025
        %vm878 = vcmp.gt.f32.partialorder %v834, 0.0025
        %vm879 = vcmp.gt.f32.partialorder %v836, 0.0025
        %vm880 = vcmp.gt.f32.partialorder %v838, 0.0025
        %vm881 = vcmp.gt.f32.partialorder %v840, 0.0025
        %vm882 = vcmp.gt.f32.partialorder %v842, 0.0025
        %vm883 = vcmp.gt.f32.partialorder %v844, 0.0025
        %vm884 = vcmp.gt.f32.partialorder %v846, 0.0025
        %vm885 = vcmp.gt.f32.partialorder %v848, 0.0025
        %vm886 = vcmp.gt.f32.partialorder %v850, 0.0025
        %vm887 = vcmp.gt.f32.partialorder %v852, 0.0025
        %vm888 = vcmp.gt.f32.partialorder %v854, 0.0025
        %vm889 = vcmp.gt.f32.partialorder %v856, 0.0025
        %vm890 = vcmp.gt.f32.partialorder %v858, 0.0025
        %v891 = vsel %vm859, %v796, 0.0
        %v892 = vsel %vm860, %v798, 0.0
        %v893 = vsel %vm861, %v800, 0.0
        %v894 = vsel %vm862, %v802, 0.0
        %v895 = vsel %vm863, %v804, 0.0
        %v896 = vsel %vm864, %v806, 0.0
        %v897 = vsel %vm865, %v808, 0.0
        %v898 = vsel %vm866, %v810, 0.0
        %v899 = vsel %vm867, %v812, 0.0
        %v900 = vsel %vm868, %v814, 0.0
        %v901 = vsel %vm869, %v816, 0.0
        %v902 = vsel %vm870, %v818, 0.0
        %v903 = vsel %vm871, %v820, 0.0
        %v904 = vsel %vm872, %v822, 0.0
        %v905 = vsel %vm873, %v824, 0.0
        %v906 = vsel %vm874, %v826, 0.0
        %v907 = vsel %vm875, %v828, 0.0
        %v908 = vsel %vm876, %v830, 0.0
        %v909 = vsel %vm877, %v832, 0.0
        %v910 = vsel %vm878, %v834, 0.0
        %v911 = vsel %vm879, %v836, 0.0
        %v912 = vsel %vm880, %v838, 0.0
        %v913 = vsel %vm881, %v840, 0.0
        %v914 = vsel %vm882, %v842, 0.0
        %v915 = vsel %vm883, %v844, 0.0
        %v916 = vsel %vm884, %v846, 0.0
        %v917 = vsel %vm885, %v848, 0.0
        %v918 = vsel %vm886, %v850, 0.0
        %v919 = vsel %vm887, %v852, 0.0
        %v920 = vsel %vm888, %v854, 0.0
        %v921 = vsel %vm889, %v856, 0.0
        %v922 = vsel %vm890, %v858, 0.0
        %923 = vadd.xlane.f32.xlu0 %v891
        %v924 = vpop.xlane.xlu0 %923
        %925 = vadd.xlane.f32.xlu0 %v892
        %v926 = vpop.xlane.xlu0 %925
        %927 = vadd.xlane.f32.xlu0 %v893
        %v928 = vpop.xlane.xlu0 %927
        %929 = vadd.xlane.f32.xlu0 %v894
        %v930 = vpop.xlane.xlu0 %929
        %931 = vadd.xlane.f32.xlu0 %v895
        %v932 = vpop.xlane.xlu0 %931
        %933 = vadd.xlane.f32.xlu0 %v896
        %v934 = vpop.xlane.xlu0 %933
        %935 = vadd.xlane.f32.xlu0 %v897
        %v936 = vpop.xlane.xlu0 %935
        %937 = vadd.xlane.f32.xlu0 %v898
        %v938 = vpop.xlane.xlu0 %937
        %939 = vadd.xlane.f32.xlu0 %v899
        %v940 = vpop.xlane.xlu0 %939
        %941 = vadd.xlane.f32.xlu0 %v900
        %v942 = vpop.xlane.xlu0 %941
        %943 = vadd.xlane.f32.xlu0 %v901
        %v944 = vpop.xlane.xlu0 %943
        %945 = vadd.xlane.f32.xlu0 %v902
        %v946 = vpop.xlane.xlu0 %945
        %947 = vadd.xlane.f32.xlu0 %v903
        %v948 = vpop.xlane.xlu0 %947
        %949 = vadd.xlane.f32.xlu0 %v904
        %v950 = vpop.xlane.xlu0 %949
        %951 = vadd.xlane.f32.xlu0 %v905
        %v952 = vpop.xlane.xlu0 %951
        %953 = vadd.xlane.f32.xlu0 %v906
        %v954 = vpop.xlane.xlu0 %953
        %955 = vadd.xlane.f32.xlu0 %v907
        %v956 = vpop.xlane.xlu0 %955
        %957 = vadd.xlane.f32.xlu0 %v908
        %v958 = vpop.xlane.xlu0 %957
        %959 = vadd.xlane.f32.xlu0 %v909
        %v960 = vpop.xlane.xlu0 %959
        %961 = vadd.xlane.f32.xlu0 %v910
        %v962 = vpop.xlane.xlu0 %961
        %963 = vadd.xlane.f32.xlu0 %v911
        %v964 = vpop.xlane.xlu0 %963
        %965 = vadd.xlane.f32.xlu0 %v912
        %v966 = vpop.xlane.xlu0 %965
        %967 = vadd.xlane.f32.xlu0 %v913
        %v968 = vpop.xlane.xlu0 %967
        %969 = vadd.xlane.f32.xlu0 %v914
        %v970 = vpop.xlane.xlu0 %969
        %971 = vadd.xlane.f32.xlu0 %v915
        %v972 = vpop.xlane.xlu0 %971
        %973 = vadd.xlane.f32.xlu0 %v916
        %v974 = vpop.xlane.xlu0 %973
        %975 = vadd.xlane.f32.xlu0 %v917
        %v976 = vpop.xlane.xlu0 %975
        %977 = vadd.xlane.f32.xlu0 %v918
        %v978 = vpop.xlane.xlu0 %977
        %979 = vadd.xlane.f32.xlu0 %v919
        %v980 = vpop.xlane.xlu0 %979
        %981 = vadd.xlane.f32.xlu0 %v920
        %v982 = vpop.xlane.xlu0 %981
        %983 = vadd.xlane.f32.xlu0 %v921
        %v984 = vpop.xlane.xlu0 %983
        %985 = vadd.xlane.f32.xlu0 %v922
        %v986 = vpop.xlane.xlu0 %985
        %v987 = vmax.f32 %v924, 1e-12
        %v988 = vmax.f32 %v926, 1e-12
        %v989 = vmax.f32 %v928, 1e-12
        %v990 = vmax.f32 %v930, 1e-12
        %v991 = vmax.f32 %v932, 1e-12
        %v992 = vmax.f32 %v934, 1e-12
        %v993 = vmax.f32 %v936, 1e-12
        %v994 = vmax.f32 %v938, 1e-12
        %v995 = vmax.f32 %v940, 1e-12
        %v996 = vmax.f32 %v942, 1e-12
        %v997 = vmax.f32 %v944, 1e-12
        %v998 = vmax.f32 %v946, 1e-12
        %v999 = vmax.f32 %v948, 1e-12
        %v1000 = vmax.f32 %v950, 1e-12
        %v1001 = vmax.f32 %v952, 1e-12
        %v1002 = vmax.f32 %v954, 1e-12
        %v1003 = vmax.f32 %v956, 1e-12
        %v1004 = vmax.f32 %v958, 1e-12
        %v1005 = vmax.f32 %v960, 1e-12
        %v1006 = vmax.f32 %v962, 1e-12
        %v1007 = vmax.f32 %v964, 1e-12
        %v1008 = vmax.f32 %v966, 1e-12
        %v1009 = vmax.f32 %v968, 1e-12
        %v1010 = vmax.f32 %v970, 1e-12
        %v1011 = vmax.f32 %v972, 1e-12
        %v1012 = vmax.f32 %v974, 1e-12
        %v1013 = vmax.f32 %v976, 1e-12
        %v1014 = vmax.f32 %v978, 1e-12
        %v1015 = vmax.f32 %v980, 1e-12
        %v1016 = vmax.f32 %v982, 1e-12
        %v1017 = vmax.f32 %v984, 1e-12
        %v1018 = vmax.f32 %v986, 1e-12
        %v1019 = vrcp.pop %v987
        %v1020 = vmul.f32 %v891, %v1019
        %v1021 = vrcp.pop %v988
        %v1022 = vmul.f32 %v892, %v1021
        %v1023 = vrcp.pop %v989
        %v1024 = vmul.f32 %v893, %v1023
        %v1025 = vrcp.pop %v990
        %v1026 = vmul.f32 %v894, %v1025
        %v1027 = vrcp.pop %v991
        %v1028 = vmul.f32 %v895, %v1027
        %v1029 = vrcp.pop %v992
        %v1030 = vmul.f32 %v896, %v1029
        %v1031 = vrcp.pop %v993
        %v1032 = vmul.f32 %v897, %v1031
        %v1033 = vrcp.pop %v994
        %v1034 = vmul.f32 %v898, %v1033
        %v1035 = vrcp.pop %v995
        %v1036 = vmul.f32 %v899, %v1035
        %v1037 = vrcp.pop %v996
        %v1038 = vmul.f32 %v900, %v1037
        %v1039 = vrcp.pop %v997
        %v1040 = vmul.f32 %v901, %v1039
        %v1041 = vrcp.pop %v998
        %v1042 = vmul.f32 %v902, %v1041
        %v1043 = vrcp.pop %v999
        %v1044 = vmul.f32 %v903, %v1043
        %v1045 = vrcp.pop %v1000
        %v1046 = vmul.f32 %v904, %v1045
        %v1047 = vrcp.pop %v1001
        %v1048 = vmul.f32 %v905, %v1047
        %v1049 = vrcp.pop %v1002
        %v1050 = vmul.f32 %v906, %v1049
        %v1051 = vrcp.pop %v1003
        %v1052 = vmul.f32 %v907, %v1051
        %v1053 = vrcp.pop %v1004
        %v1054 = vmul.f32 %v908, %v1053
        %v1055 = vrcp.pop %v1005
        %v1056 = vmul.f32 %v909, %v1055
        %v1057 = vrcp.pop %v1006
        %v1058 = vmul.f32 %v910, %v1057
        %v1059 = vrcp.pop %v1007
        %v1060 = vmul.f32 %v911, %v1059
        %v1061 = vrcp.pop %v1008
        %v1062 = vmul.f32 %v912, %v1061
        %v1063 = vrcp.pop %v1009
        %v1064 = vmul.f32 %v913, %v1063
        %v1065 = vrcp.pop %v1010
        %v1066 = vmul.f32 %v914, %v1065
        %v1067 = vrcp.pop %v1011
        %v1068 = vmul.f32 %v915, %v1067
        %v1069 = vrcp.pop %v1012
        %v1070 = vmul.f32 %v916, %v1069
        %v1071 = vrcp.pop %v1013
        %v1072 = vmul.f32 %v917, %v1071
        %v1073 = vrcp.pop %v1014
        %v1074 = vmul.f32 %v918, %v1073
        %v1075 = vrcp.pop %v1015
        %v1076 = vmul.f32 %v919, %v1075
        %v1077 = vrcp.pop %v1016
        %v1078 = vmul.f32 %v920, %v1077
        %v1079 = vrcp.pop %v1017
        %v1080 = vmul.f32 %v921, %v1079
        %v1081 = vrcp.pop %v1018
        %v1082 = vmul.f32 %v922, %v1081
        %v1083 = vld [vmem:[%s2] sm:$0xff]
        %v1084 = vld [vmem:[%s2 + $0x8] sm:$0xff]
        %v1085 = vld [vmem:[%s2 + $0x10] sm:$0xff]
        %v1086 = vld [vmem:[%s2 + $0x18] sm:$0xff]
        %v1087 = vld [vmem:[%s2 + $0x20] sm:$0xff]
        %v1088 = vld [vmem:[%s2 + $0x28] sm:$0xff]
        %v1089 = vld [vmem:[%s2 + $0x30] sm:$0xff]
        %v1090 = vld [vmem:[%s2 + $0x38] sm:$0xff]
        %v1091 = vld [vmem:[%s2 + $0x40] sm:$0xff]
        %v1092 = vld [vmem:[%s2 + $0x48] sm:$0xff]
        %v1093 = vld [vmem:[%s2 + $0x50] sm:$0xff]
        %v1094 = vld [vmem:[%s2 + $0x58] sm:$0xff]
        %v1095 = vld [vmem:[%s2 + $0x60] sm:$0xff]
        %v1096 = vld [vmem:[%s2 + $0x68] sm:$0xff]
        %v1097 = vld [vmem:[%s2 + $0x70] sm:$0xff]
        %v1098 = vld [vmem:[%s2 + $0x78] sm:$0xff]
        %1099 = vmatprep.subr.mxu0 0.0
        %1100 = vmatpush1.msra.mxu0 %v1098
        %1101 = vmatprep.subr.mxu0 0.0
        %1102 = vmatpush1.msra.mxu0 %v1097
        %1103 = vmatprep.subr.mxu0 0.0
        %1104 = vmatpush1.msra.mxu0 %v1096
        %1105 = vmatprep.subr.mxu0 0.0
        %1106 = vmatpush1.msra.mxu0 %v1095
        %1107 = vmatprep.subr.mxu0 0.0
        %1108 = vmatpush1.msra.mxu0 %v1094
        %1109 = vmatprep.subr.mxu0 0.0
        %1110 = vmatpush1.msra.mxu0 %v1093
        %1111 = vmatprep.subr.mxu0 0.0
        %1112 = vmatpush1.msra.mxu0 %v1092
        %1113 = vmatprep.subr.mxu0 0.0
        %1114 = vmatpush1.msra.mxu0 %v1091
        %1115 = vmatprep.subr.mxu0 0.0
        %1116 = vmatpush1.msra.mxu0 %v1090
        %1117 = vmatprep.subr.mxu0 0.0
        %1118 = vmatpush1.msra.mxu0 %v1089
        %1119 = vmatprep.subr.mxu0 0.0
        %1120 = vmatpush1.msra.mxu0 %v1088
        %1121 = vmatprep.subr.mxu0 0.0
        %1122 = vmatpush1.msra.mxu0 %v1087
        %1123 = vmatprep.subr.mxu0 0.0
        %1124 = vmatpush1.msra.mxu0 %v1086
        %1125 = vmatprep.subr.mxu0 0.0
        %1126 = vmatpush1.msra.mxu0 %v1085
        %1127 = vmatprep.subr.mxu0 0.0
        %1128 = vmatpush1.msra.mxu0 %v1084
        %1129 = vmatprep.subr.mxu0 0.0
        %1130 = vmatpush1.msra.mxu0 %v1083
        %1131 = vmatprep.subr.mxu0 0.0
        %1132 = vmatpush2.msra.mxu0 0.0
        %1133 = vmatprep.subr.mxu0 0.0
        %1134 = vmatpush2.msra.mxu0 0.0
        %1135 = vmatprep.subr.mxu0 0.0
        %1136 = vmatpush2.msra.mxu0 0.0
        %1137 = vmatprep.subr.mxu0 0.0
        %1138 = vmatpush2.msra.mxu0 0.0
        %1139 = vmatprep.subr.mxu0 0.0
        %1140 = vmatpush2.msra.mxu0 0.0
        %1141 = vmatprep.subr.mxu0 0.0
        %1142 = vmatpush2.msra.mxu0 0.0
        %1143 = vmatprep.subr.mxu0 0.0
        %1144 = vmatpush2.msra.mxu0 0.0
        %1145 = vmatprep.subr.mxu0 0.0
        %1146 = vmatpush2.msra.mxu0 0.0
        %1147 = vmatprep.subr.mxu0 0.0
        %1148 = vmatpush2.msra.mxu0 0.0
        %1149 = vmatprep.subr.mxu0 0.0
        %1150 = vmatpush2.msra.mxu0 0.0
        %1151 = vmatprep.subr.mxu0 0.0
        %1152 = vmatpush2.msra.mxu0 0.0
        %1153 = vmatprep.subr.mxu0 0.0
        %1154 = vmatpush2.msra.mxu0 0.0
        %1155 = vmatprep.subr.mxu0 0.0
        %1156 = vmatpush2.msra.mxu0 0.0
        %1157 = vmatprep.subr.mxu0 0.0
        %1158 = vmatpush2.msra.mxu0 0.0
        %1159 = vmatprep.subr.mxu0 0.0
        %1160 = vmatpush2.msra.mxu0 0.0
        %1161 = vmatprep.subr.mxu0 0.0
        %1162 = vmatpush2.msra.mxu0 0.0
        %1163 = vmatprep.mubr.f32.mxu0 0.0
        %1164 = vmatmul.mubr.f32.gmra.mxu0 %v1020
        %v1165 = vpop.f32.mrf.mxu0
        %v1166 = vadd.f32 0.0, %v1165
        %v1167 = vpop.f32.mrf.mxu0
        %1168 = vmatprep.mubr.f32.mxu0 0.0
        %1169 = vmatmul.mubr.f32.gmra.mxu0 %v1022
        %v1170 = vpop.f32.mrf.mxu0
        %v1171 = vadd.f32 0.0, %v1170
        %v1172 = vpop.f32.mrf.mxu0
        %1173 = vmatprep.mubr.f32.mxu0 0.0
        %1174 = vmatmul.mubr.f32.gmra.mxu0 %v1024
        %v1175 = vpop.f32.mrf.mxu0
        %v1176 = vadd.f32 0.0, %v1175
        %v1177 = vpop.f32.mrf.mxu0
        %1178 = vmatprep.mubr.f32.mxu0 0.0
        %1179 = vmatmul.mubr.f32.gmra.mxu0 %v1026
        %v1180 = vpop.f32.mrf.mxu0
        %v1181 = vadd.f32 0.0, %v1180
        %v1182 = vpop.f32.mrf.mxu0
        %1183 = vmatprep.mubr.f32.mxu0 0.0
        %1184 = vmatmul.mubr.f32.gmra.mxu0 %v1028
        %v1185 = vpop.f32.mrf.mxu0
        %v1186 = vadd.f32 0.0, %v1185
        %v1187 = vpop.f32.mrf.mxu0
        %1188 = vmatprep.mubr.f32.mxu0 0.0
        %1189 = vmatmul.mubr.f32.gmra.mxu0 %v1030
        %v1190 = vpop.f32.mrf.mxu0
        %v1191 = vadd.f32 0.0, %v1190
        %v1192 = vpop.f32.mrf.mxu0
        %1193 = vmatprep.mubr.f32.mxu0 0.0
        %1194 = vmatmul.mubr.f32.gmra.mxu0 %v1032
        %v1195 = vpop.f32.mrf.mxu0
        %v1196 = vadd.f32 0.0, %v1195
        %v1197 = vpop.f32.mrf.mxu0
        %1198 = vmatprep.mubr.f32.mxu0 0.0
        %1199 = vmatmul.mubr.f32.gmra.mxu0 %v1034
        %v1200 = vpop.f32.mrf.mxu0
        %v1201 = vadd.f32 0.0, %v1200
        %v1202 = vpop.f32.mrf.mxu0
        %1203 = vmatprep.mubr.f32.mxu0 0.0
        %1204 = vmatmul.mubr.f32.gmra.mxu0 %v1036
        %v1205 = vpop.f32.mrf.mxu0
        %v1206 = vadd.f32 0.0, %v1205
        %v1207 = vpop.f32.mrf.mxu0
        %1208 = vmatprep.mubr.f32.mxu0 0.0
        %1209 = vmatmul.mubr.f32.gmra.mxu0 %v1038
        %v1210 = vpop.f32.mrf.mxu0
        %v1211 = vadd.f32 0.0, %v1210
        %v1212 = vpop.f32.mrf.mxu0
        %1213 = vmatprep.mubr.f32.mxu0 0.0
        %1214 = vmatmul.mubr.f32.gmra.mxu0 %v1040
        %v1215 = vpop.f32.mrf.mxu0
        %v1216 = vadd.f32 0.0, %v1215
        %v1217 = vpop.f32.mrf.mxu0
        %1218 = vmatprep.mubr.f32.mxu0 0.0
        %1219 = vmatmul.mubr.f32.gmra.mxu0 %v1042
        %v1220 = vpop.f32.mrf.mxu0
        %v1221 = vadd.f32 0.0, %v1220
        %v1222 = vpop.f32.mrf.mxu0
        %1223 = vmatprep.mubr.f32.mxu0 0.0
        %1224 = vmatmul.mubr.f32.gmra.mxu0 %v1044
        %v1225 = vpop.f32.mrf.mxu0
        %v1226 = vadd.f32 0.0, %v1225
        %v1227 = vpop.f32.mrf.mxu0
        %1228 = vmatprep.mubr.f32.mxu0 0.0
        %1229 = vmatmul.mubr.f32.gmra.mxu0 %v1046
        %v1230 = vpop.f32.mrf.mxu0
        %v1231 = vadd.f32 0.0, %v1230
        %v1232 = vpop.f32.mrf.mxu0
        %1233 = vmatprep.mubr.f32.mxu0 0.0
        %1234 = vmatmul.mubr.f32.gmra.mxu0 %v1048
        %v1235 = vpop.f32.mrf.mxu0
        %v1236 = vadd.f32 0.0, %v1235
        %v1237 = vpop.f32.mrf.mxu0
        %1238 = vmatprep.mubr.f32.mxu0 0.0
        %1239 = vmatmul.mubr.f32.gmra.mxu0 %v1050
        %v1240 = vpop.f32.mrf.mxu0
        %v1241 = vadd.f32 0.0, %v1240
        %v1242 = vpop.f32.mrf.mxu0
        %1243 = vmatprep.mubr.f32.mxu0 0.0
        %1244 = vmatmul.mubr.f32.gmra.mxu0 %v1052
        %v1245 = vpop.f32.mrf.mxu0
        %v1246 = vadd.f32 0.0, %v1245
        %v1247 = vpop.f32.mrf.mxu0
        %1248 = vmatprep.mubr.f32.mxu0 0.0
        %1249 = vmatmul.mubr.f32.gmra.mxu0 %v1054
        %v1250 = vpop.f32.mrf.mxu0
        %v1251 = vadd.f32 0.0, %v1250
        %v1252 = vpop.f32.mrf.mxu0
        %1253 = vmatprep.mubr.f32.mxu0 0.0
        %1254 = vmatmul.mubr.f32.gmra.mxu0 %v1056
        %v1255 = vpop.f32.mrf.mxu0
        %v1256 = vadd.f32 0.0, %v1255
        %v1257 = vpop.f32.mrf.mxu0
        %1258 = vmatprep.mubr.f32.mxu0 0.0
        %1259 = vmatmul.mubr.f32.gmra.mxu0 %v1058
        %v1260 = vpop.f32.mrf.mxu0
        %v1261 = vadd.f32 0.0, %v1260
        %v1262 = vpop.f32.mrf.mxu0
        %1263 = vmatprep.mubr.f32.mxu0 0.0
        %1264 = vmatmul.mubr.f32.gmra.mxu0 %v1060
        %v1265 = vpop.f32.mrf.mxu0
        %v1266 = vadd.f32 0.0, %v1265
        %v1267 = vpop.f32.mrf.mxu0
        %1268 = vmatprep.mubr.f32.mxu0 0.0
        %1269 = vmatmul.mubr.f32.gmra.mxu0 %v1062
        %v1270 = vpop.f32.mrf.mxu0
        %v1271 = vadd.f32 0.0, %v1270
        %v1272 = vpop.f32.mrf.mxu0
        %1273 = vmatprep.mubr.f32.mxu0 0.0
        %1274 = vmatmul.mubr.f32.gmra.mxu0 %v1064
        %v1275 = vpop.f32.mrf.mxu0
        %v1276 = vadd.f32 0.0, %v1275
        %v1277 = vpop.f32.mrf.mxu0
        %1278 = vmatprep.mubr.f32.mxu0 0.0
        %1279 = vmatmul.mubr.f32.gmra.mxu0 %v1066
        %v1280 = vpop.f32.mrf.mxu0
        %v1281 = vadd.f32 0.0, %v1280
        %v1282 = vpop.f32.mrf.mxu0
        %1283 = vmatprep.mubr.f32.mxu0 0.0
        %1284 = vmatmul.mubr.f32.gmra.mxu0 %v1068
        %v1285 = vpop.f32.mrf.mxu0
        %v1286 = vadd.f32 0.0, %v1285
        %v1287 = vpop.f32.mrf.mxu0
        %1288 = vmatprep.mubr.f32.mxu0 0.0
        %1289 = vmatmul.mubr.f32.gmra.mxu0 %v1070
        %v1290 = vpop.f32.mrf.mxu0
        %v1291 = vadd.f32 0.0, %v1290
        %v1292 = vpop.f32.mrf.mxu0
        %1293 = vmatprep.mubr.f32.mxu0 0.0
        %1294 = vmatmul.mubr.f32.gmra.mxu0 %v1072
        %v1295 = vpop.f32.mrf.mxu0
        %v1296 = vadd.f32 0.0, %v1295
        %v1297 = vpop.f32.mrf.mxu0
        %1298 = vmatprep.mubr.f32.mxu0 0.0
        %1299 = vmatmul.mubr.f32.gmra.mxu0 %v1074
        %v1300 = vpop.f32.mrf.mxu0
        %v1301 = vadd.f32 0.0, %v1300
        %v1302 = vpop.f32.mrf.mxu0
        %1303 = vmatprep.mubr.f32.mxu0 0.0
        %1304 = vmatmul.mubr.f32.gmra.mxu0 %v1076
        %v1305 = vpop.f32.mrf.mxu0
        %v1306 = vadd.f32 0.0, %v1305
        %v1307 = vpop.f32.mrf.mxu0
        %1308 = vmatprep.mubr.f32.mxu0 0.0
        %1309 = vmatmul.mubr.f32.gmra.mxu0 %v1078
        %v1310 = vpop.f32.mrf.mxu0
        %v1311 = vadd.f32 0.0, %v1310
        %v1312 = vpop.f32.mrf.mxu0
        %1313 = vmatprep.mubr.f32.mxu0 0.0
        %1314 = vmatmul.mubr.f32.gmra.mxu0 %v1080
        %v1315 = vpop.f32.mrf.mxu0
        %v1316 = vadd.f32 0.0, %v1315
        %v1317 = vpop.f32.mrf.mxu0
        %1318 = vmatprep.mubr.f32.mxu0 0.0
        %1319 = vmatmul.mubr.f32.gmra.mxu0 %v1082
        %v1320 = vpop.f32.mrf.mxu0
        %v1321 = vadd.f32 0.0, %v1320
        %v1322 = vpop.f32.mrf.mxu0
        %1323 = vdwg.mxu0
        %1324 = vst.msk [vmem:[%s210] sm:$0xff] %vm249, %v1166
        %1325 = vst.msk [vmem:[%s210 + $0x8] sm:$0xff] %vm249, %v1171
        %1326 = vst.msk [vmem:[%s210 + $0x10] sm:$0xff] %vm249, %v1176
        %1327 = vst.msk [vmem:[%s210 + $0x18] sm:$0xff] %vm249, %v1181
        %1328 = vst.msk [vmem:[%s210 + $0x20] sm:$0xff] %vm249, %v1186
        %1329 = vst.msk [vmem:[%s210 + $0x28] sm:$0xff] %vm249, %v1191
        %1330 = vst.msk [vmem:[%s210 + $0x30] sm:$0xff] %vm249, %v1196
        %1331 = vst.msk [vmem:[%s210 + $0x38] sm:$0xff] %vm249, %v1201
        %1332 = vst.msk [vmem:[%s210 + $0x40] sm:$0xff] %vm249, %v1206
        %1333 = vst.msk [vmem:[%s210 + $0x48] sm:$0xff] %vm249, %v1211
        %1334 = vst.msk [vmem:[%s210 + $0x50] sm:$0xff] %vm249, %v1216
        %1335 = vst.msk [vmem:[%s210 + $0x58] sm:$0xff] %vm249, %v1221
        %1336 = vst.msk [vmem:[%s210 + $0x60] sm:$0xff] %vm249, %v1226
        %1337 = vst.msk [vmem:[%s210 + $0x68] sm:$0xff] %vm249, %v1231
        %1338 = vst.msk [vmem:[%s210 + $0x70] sm:$0xff] %vm249, %v1236
        %1339 = vst.msk [vmem:[%s210 + $0x78] sm:$0xff] %vm249, %v1241
        %1340 = vst.msk [vmem:[%s210 + $0x80] sm:$0xff] %vm249, %v1246
        %1341 = vst.msk [vmem:[%s210 + $0x88] sm:$0xff] %vm249, %v1251
        %1342 = vst.msk [vmem:[%s210 + $0x90] sm:$0xff] %vm249, %v1256
        %1343 = vst.msk [vmem:[%s210 + $0x98] sm:$0xff] %vm249, %v1261
        %1344 = vst.msk [vmem:[%s210 + $0xa0] sm:$0xff] %vm249, %v1266
        %1345 = vst.msk [vmem:[%s210 + $0xa8] sm:$0xff] %vm249, %v1271
        %1346 = vst.msk [vmem:[%s210 + $0xb0] sm:$0xff] %vm249, %v1276
        %1347 = vst.msk [vmem:[%s210 + $0xb8] sm:$0xff] %vm249, %v1281
        %1348 = vst.msk [vmem:[%s210 + $0xc0] sm:$0xff] %vm249, %v1286
        %1349 = vst.msk [vmem:[%s210 + $0xc8] sm:$0xff] %vm249, %v1291
        %1350 = vst.msk [vmem:[%s210 + $0xd0] sm:$0xff] %vm249, %v1296
        %1351 = vst.msk [vmem:[%s210 + $0xd8] sm:$0xff] %vm249, %v1301
        %1352 = vst.msk [vmem:[%s210 + $0xe0] sm:$0xff] %vm249, %v1306
        %1353 = vst.msk [vmem:[%s210 + $0xe8] sm:$0xff] %vm249, %v1311
        %1354 = vst.msk [vmem:[%s210 + $0xf0] sm:$0xff] %vm249, %v1316
        %1355 = vst.msk [vmem:[%s210 + $0xf8] sm:$0xff] %vm249, %v1321
        %1356 = vst [vmem:[%s199] sm:$0xff] %v1020
        %1357 = vst [vmem:[%s199 + $0x8] sm:$0xff] %v1022
        %1358 = vst [vmem:[%s199 + $0x10] sm:$0xff] %v1024
        %1359 = vst [vmem:[%s199 + $0x18] sm:$0xff] %v1026
        %1360 = vst [vmem:[%s199 + $0x20] sm:$0xff] %v1028
        %1361 = vst [vmem:[%s199 + $0x28] sm:$0xff] %v1030
        %1362 = vst [vmem:[%s199 + $0x30] sm:$0xff] %v1032
        %1363 = vst [vmem:[%s199 + $0x38] sm:$0xff] %v1034
        %1364 = vst [vmem:[%s199 + $0x40] sm:$0xff] %v1036
        %1365 = vst [vmem:[%s199 + $0x48] sm:$0xff] %v1038
        %1366 = vst [vmem:[%s199 + $0x50] sm:$0xff] %v1040
        %1367 = vst [vmem:[%s199 + $0x58] sm:$0xff] %v1042
        %1368 = vst [vmem:[%s199 + $0x60] sm:$0xff] %v1044
        %1369 = vst [vmem:[%s199 + $0x68] sm:$0xff] %v1046
        %1370 = vst [vmem:[%s199 + $0x70] sm:$0xff] %v1048
        %1371 = vst [vmem:[%s199 + $0x78] sm:$0xff] %v1050
        %1372 = vst [vmem:[%s199 + $0x80] sm:$0xff] %v1052
        %1373 = vst [vmem:[%s199 + $0x88] sm:$0xff] %v1054
        %1374 = vst [vmem:[%s199 + $0x90] sm:$0xff] %v1056
        %1375 = vst [vmem:[%s199 + $0x98] sm:$0xff] %v1058
        %1376 = vst [vmem:[%s199 + $0xa0] sm:$0xff] %v1060
        %1377 = vst [vmem:[%s199 + $0xa8] sm:$0xff] %v1062
        %1378 = vst [vmem:[%s199 + $0xb0] sm:$0xff] %v1064
        %1379 = vst [vmem:[%s199 + $0xb8] sm:$0xff] %v1066
        %1380 = vst [vmem:[%s199 + $0xc0] sm:$0xff] %v1068
        %1381 = vst [vmem:[%s199 + $0xc8] sm:$0xff] %v1070
        %1382 = vst [vmem:[%s199 + $0xd0] sm:$0xff] %v1072
        %1383 = vst [vmem:[%s199 + $0xd8] sm:$0xff] %v1074
        %1384 = vst [vmem:[%s199 + $0xe0] sm:$0xff] %v1076
        %1385 = vst [vmem:[%s199 + $0xe8] sm:$0xff] %v1078
        %1386 = vst [vmem:[%s199 + $0xf0] sm:$0xff] %v1080
        %1387 = vst [vmem:[%s199 + $0xf8] sm:$0xff] %v1082
        %s1388 = smul.u32 32, %s19
        %p1389 = scmp.lt.s32.totalorder %s1388, 63
        %s1390 = scalar_select %p1389, %s1388, 63
        %s1391 = smul.addr %s1390, 8
        %s1392 = scalar_lea.vmem %s3, %s1391
        %s1393 = sand.u32 %s121, 1
        %s1394 = scalar_lea.sflag [#allocation3], %s1393
        %s1395 = sand.u32 %s121, 1
        %s1396 = smul.addr %s1395, 256
        %s1397 = scalar_lea.vmem [#allocation2], %s1396
        // Predicated region
        $region33: #{tpu_custom_call.1} parent=31 // pred_check
          %p1398 = pneg %p105
        $region34: #{tpu_custom_call.1} parent=31 // pred_check_branch
          %1400 = sbr.rel (%p1398) target = $region36
        $region35: #{tpu_custom_call.1} parent=31 // pred_region
          %s1401 = smul.u32 32, %s19
        $region36: #{tpu_custom_call.1} parent=31 // pred_fallthru
          _
        // Predicated region
        $region37: #{tpu_custom_call.1} parent=31 // pred_check
          %p1402 = pneg %p131
        $region38: #{tpu_custom_call.1} parent=31 // pred_check_branch
          %1404 = sbr.rel (%p1402) target = $region40
        $region39: #{tpu_custom_call.1} parent=31 // pred_region
          %s1405 = smul.u32 32, %s19
          %s1407 = ssub.s32 4096, 4096
          %1408 = vsyncadd %s1394, %s1407
          %s1409 = smul.addr %s1405, 128
          %s1410 = scalar_lea.hbm %s4, %s1409
          %s1411 = sshll.u32 %s1397, 4
          %s1412 = int_to_ptr.vmem [resolvable:$true] %s1411
          %1417 = dma.vmem_to_hbm [thread:$0]  %s1412, 4096, %s1410, %s1394, 128, 128, 8
        $region40: #{tpu_custom_call.1} parent=31 // pred_fallthru
          _
      $region32: #{tpu_custom_call.1} parent=5 // pred_fallthru
        _
      %p1418 = scmp.le.s32.totalorder 2, %s14
      // Predicated region
      $region41: #{tpu_custom_call.1} parent=5 // pred_check
        %p1419 = pneg %p1418
      $region42: #{tpu_custom_call.1} parent=5 // pred_check_branch
        %1421 = sbr.rel (%p1419) target = $region44
      $region43: #{tpu_custom_call.1} parent=5 // pred_region
        %s1422 = ssub.s32 %s14, 2
        // Predicated region
        $region45: #{tpu_custom_call.1} parent=43 // pred_check
          %p1423 = pneg %p111
        $region46: #{tpu_custom_call.1} parent=43 // pred_check_branch
          %1425 = sbr.rel (%p1423) target = $region48
        $region47: #{tpu_custom_call.1} parent=43 // pred_region
          %s1426 = smul.u32 32, %s20
          %p1427 = scmp.lt.s32.totalorder %s1426, 63
          %s1428 = scalar_select %p1427, %s1426, 63
          %s1429 = smul.addr %s1428, 8
          %s1430 = scalar_lea.vmem %s3, %s1429
        $region48: #{tpu_custom_call.1} parent=43 // pred_fallthru
          _
        // Predicated region
        $region49: #{tpu_custom_call.1} parent=43 // pred_check
          %p1431 = pneg %p137
        $region50: #{tpu_custom_call.1} parent=43 // pred_check_branch
          %1433 = sbr.rel (%p1431) target = $region52
        $region51: #{tpu_custom_call.1} parent=43 // pred_region
          %s1434 = sand.u32 %s122, 1
          %s1435 = scalar_lea.sflag [#allocation3], %s1434
          %s1436 = sand.u32 %s122, 1
          %s1437 = smul.addr %s1436, 256
          %s1438 = scalar_lea.vmem [#allocation2], %s1437
          %1439 = dma.done %s1435, 4096
        $region52: #{tpu_custom_call.1} parent=43 // pred_fallthru
          _
      $region44: #{tpu_custom_call.1} parent=5 // pred_fallthru
        _
    $region6: #{tpu_custom_call.1} parent=1 // loop_footer
      %s18 = sadd.s32 1, %s14
    $region7: #{tpu_custom_call.1} parent=1 // loop_footer_branch
      %13 = sbr.rel target = $region3
    $region8: #{tpu_custom_call.1} parent=1 // loop_exit
      _
    %1440 = vsyncpa [#allocation3], 1
    %s1441 = scalar_lea.sflag [#allocation3], 1
    %1442 = vsyncpa %s1441, 1

</llo_original>
